<compile_context>
chip_gen: v5e
topology: v5e:2x2
jax: 0.10.0
libtpu: 0.0.40
codegen_flags: <defaults>
</compile_context>

<pallas_src>
import functools

import jax
import jax.numpy as jnp
from jax.experimental import pallas as pl
from jax.experimental.pallas import tpu as pltpu


# ----------------------------- kernels --------------------------------------

_CONTRACT_IN_FEATURES = (((1,), (1,)), ((), ()))  # x:(tb,K) . w:(N,K) -> (tb,N)


def _ae_full_kernel(x_ref, we_ref, be_ref, wd_ref, bd_ref, out_ref):
    # x_ref:  (tb, dim_X)       batch tile
    # we_ref: (dim_Hp, dim_X)   encoder weight as stored (out, in), H padded to 128-mult
    # be_ref: (1, dim_Hp)
    # wd_ref: (dim_X, dim_Hp)   decoder weight as stored (out, in), zero-padded columns
    # bd_ref: (1, dim_X)
    x = x_ref[...]
    h = jax.nn.sigmoid(
        jax.lax.dot_general(x, we_ref[...], _CONTRACT_IN_FEATURES,
                            preferred_element_type=jnp.float32)
        + be_ref[...])
    # H never leaves VMEM/registers on the reconstruction path.
    out = jax.nn.sigmoid(
        jax.lax.dot_general(h, wd_ref[...], _CONTRACT_IN_FEATURES,
                            preferred_element_type=jnp.float32)
        + bd_ref[...])
    out_ref[...] = out.astype(out_ref.dtype)


def _ae_encode_kernel(x_ref, we_ref, be_ref, h_ref):
    # rep=True path: encoder only, lane-dense (dim_Hp) output slab.
    x = x_ref[...]
    h = jax.nn.sigmoid(
        jax.lax.dot_general(x, we_ref[...], _CONTRACT_IN_FEATURES,
                            preferred_element_type=jnp.float32)
        + be_ref[...])
    h_ref[...] = h.astype(h_ref.dtype)


# ----------------------------- wrapper ---------------------------------------


def _round_up(n, m):
    return ((n + m - 1) // m) * m


def _pick_tb(B, dim_X, dim_Hp, itemsize, budget=40 * 1024 * 1024):
    """Largest batch tile (<=512, multiple of 8) whose working set fits the budget."""
    fixed = 2 * dim_X * dim_Hp * itemsize + (dim_X + dim_Hp) * itemsize  # resident W/b
    tb = min(512, _round_up(B, 8))
    while tb > 8:
        per_step = 2 * tb * (dim_X + max(dim_X, dim_Hp)) * itemsize  # dbl-buffered x + out
        if fixed + per_step <= budget:
            break
        tb = max(8, _round_up(tb // 2, 8))
    # Keep >=4 grid steps when the batch is big enough so the "parallel" batch
    # axis can shard across both v7x TensorCores.
    if B >= 4 * 8:
        tb = min(tb, max(8, _round_up(pl.cdiv(B, 4), 8)))
    return max(8, tb)


@functools.partial(jax.jit, static_argnames=("rep", "tb"))
def autoencoder_forward(x, we, be, wd, bd, rep=False, tb=None):
    """x: [B, dim_X]; we: [dim_H, dim_X]; be: [dim_H]; wd: [dim_X, dim_H]; bd: [dim_X]."""
    B, dim_X = x.shape
    dim_H = we.shape[0]
    itemsize = jnp.dtype(x.dtype).itemsize

    # Lane-dense hidden dimension (multiple of 128). Zero-padded encoder rows
    # produce sigmoid(0)=0.5 in the padded h columns, but those meet zero
    # decoder columns (contribute nothing) or are sliced off on the rep path.
    dim_Hp = max(128, _round_up(dim_H, 128))
    if dim_Hp != dim_H:
        we = jnp.pad(we, ((0, dim_Hp - dim_H), (0, 0)))
        be = jnp.pad(be, (0, dim_Hp - dim_H))
        wd = jnp.pad(wd, ((0, 0), (0, dim_Hp - dim_H)))
    be2 = be.reshape(1, dim_Hp)
    bd2 = bd.reshape(1, dim_X)

    if tb is None:
        tb = _pick_tb(B, dim_X, dim_Hp, itemsize)

    # Pad the batch so the grid tiles it exactly; padded rows are sliced off.
    Bp = _round_up(B, tb)
    if Bp != B:
        x = jnp.pad(x, ((0, Bp - B), (0, 0)))
    grid = (Bp // tb,)

    compiler_params = pltpu.CompilerParams(
        dimension_semantics=("parallel",),
        vmem_limit_bytes=64 * 1024 * 1024,  # fits v7x physical VMEM; plenty on v5e/v6e
    )

    x_spec = pl.BlockSpec((tb, dim_X), lambda i: (i, 0))
    we_spec = pl.BlockSpec((dim_Hp, dim_X), lambda i: (0, 0))   # resident
    be_spec = pl.BlockSpec((1, dim_Hp), lambda i: (0, 0))       # resident
    wd_spec = pl.BlockSpec((dim_X, dim_Hp), lambda i: (0, 0))   # resident
    bd_spec = pl.BlockSpec((1, dim_X), lambda i: (0, 0))        # resident

    if rep:
        h = pl.pallas_call(
            _ae_encode_kernel,
            out_shape=jax.ShapeDtypeStruct((Bp, dim_Hp), x.dtype),
            grid_spec=pltpu.PrefetchScalarGridSpec(
                num_scalar_prefetch=0,
                grid=grid,
                in_specs=[x_spec, we_spec, be_spec],
                out_specs=pl.BlockSpec((tb, dim_Hp), lambda i: (i, 0)),
            ),
            compiler_params=compiler_params,
        )(x, we, be2)
        return h[:B, :dim_H]

    out = pl.pallas_call(
        _ae_full_kernel,
        out_shape=jax.ShapeDtypeStruct((Bp, dim_X), x.dtype),
        grid_spec=pltpu.PrefetchScalarGridSpec(
            num_scalar_prefetch=0,
            grid=grid,
            in_specs=[x_spec, we_spec, be_spec, wd_spec, bd_spec],
            out_specs=pl.BlockSpec((tb, dim_X), lambda i: (i, 0)),
        ),
        compiler_params=compiler_params,
    )(x, we, be2, wd, bd2)
    return out[:B]


# ----------------------------- reference & test ------------------------------


def _reference(x, we, be, wd, bd, rep=False):
    h = jax.nn.sigmoid(x @ we.T + be)
    if rep:
        return h
    return jax.nn.sigmoid(h @ wd.T + bd)


if __name__ == "__main__":
    key = jax.random.PRNGKey(0)
    dim_X, dim_H = 128, 32

    kx, kwe, kbe, kwd, kbd = jax.random.split(key, 5)
    # Deterministic parameter init (roughly nn.Linear uniform fan-in init).
    bound_e = 1.0 / (dim_X ** 0.5)
    bound_d = 1.0 / (dim_H ** 0.5)
    we = jax.random.uniform(kwe, (dim_H, dim_X), jnp.float32, -bound_e, bound_e)
    be = jax.random.uniform(kbe, (dim_H,), jnp.float32, -bound_e, bound_e)
    wd = jax.random.uniform(kwd, (dim_X, dim_H), jnp.float32, -bound_d, bound_d)
    bd = jax.random.uniform(kbd, (dim_X,), jnp.float32, -bound_d, bound_d)

    ok = True
    for B in (16, 20):  # 20 exercises the batch-padding path
        xb = jax.random.normal(jax.random.fold_in(kx, B), (B, dim_X), jnp.float32)

        out = autoencoder_forward(xb, we, be, wd, bd, rep=False)
        jax.block_until_ready(out)
        rep_out = autoencoder_forward(xb, we, be, wd, bd, rep=True)
        jax.block_until_ready(rep_out)

        ref_out = _reference(xb, we, be, wd, bd, rep=False)
        ref_rep = _reference(xb, we, be, wd, bd, rep=True)

        ok &= out.shape == (B, dim_X)
        ok &= rep_out.shape == (B, dim_H)
        ok &= bool(jnp.allclose(out, ref_out, atol=1e-5, rtol=1e-5))
        ok &= bool(jnp.allclose(rep_out, ref_rep, atol=1e-5, rtol=1e-5))

    assert ok
    print("KERNEL_OK")
</pallas_src>

<mosaic_0001>
module attributes {stable_mosaic.version = 11 : i64} {
  func.func @_ae_full_kernel(%arg0: i32, %arg1: memref<16x128xf32, #tpu.memory_space<vmem>>, %arg2: memref<128x128xf32, #tpu.memory_space<vmem>>, %arg3: memref<1x128xf32, #tpu.memory_space<vmem>>, %arg4: memref<128x128xf32, #tpu.memory_space<vmem>>, %arg5: memref<1x128xf32, #tpu.memory_space<vmem>>, %arg6: memref<16x128xf32, #tpu.memory_space<vmem>>) attributes {dimension_semantics = [#tpu.dimension_semantics<parallel>], iteration_bounds = array<i64: 1>, scalar_prefetch = 0 : i64, scratch_operands = 0 : i64, tpu.core_type = #tpu.core_type<tc>, window_params = [{transform_indices = @transform_0, window_bounds = array<i64: 16, 128>}, {pipeline_mode = #tpu.pipeline_mode<synchronous>, transform_indices = @transform_1, window_bounds = array<i64: 128, 128>}, {pipeline_mode = #tpu.pipeline_mode<synchronous>, transform_indices = @transform_2, window_bounds = array<i64: 1, 128>}, {pipeline_mode = #tpu.pipeline_mode<synchronous>, transform_indices = @transform_3, window_bounds = array<i64: 128, 128>}, {pipeline_mode = #tpu.pipeline_mode<synchronous>, transform_indices = @transform_4, window_bounds = array<i64: 1, 128>}, {transform_indices = @transform_5, window_bounds = array<i64: 16, 128>}]} {
    %c0 = arith.constant 0 : index
    %c0_0 = arith.constant 0 : index
    %0 = vector.load %arg1[%c0, %c0_0] : memref<16x128xf32, #tpu.memory_space<vmem>>, vector<16x128xf32>
    %c0_1 = arith.constant 0 : index
    %c0_2 = arith.constant 0 : index
    %1 = vector.load %arg2[%c0_1, %c0_2] : memref<128x128xf32, #tpu.memory_space<vmem>>, vector<128x128xf32>
    %cst = arith.constant dense<0.000000e+00> : vector<16x128xf32>
    %2 = tpu.matmul %0, %1, %cst {dimension_numbers = #tpu.dot_dimension_numbers<[1], [1], [0], [0], [0, 0, 1, 0], [], []>} : vector<16x128xf32>, vector<128x128xf32>, vector<16x128xf32> -> vector<16x128xf32>
    %c0_3 = arith.constant 0 : index
    %c0_4 = arith.constant 0 : index
    %3 = vector.load %arg3[%c0_3, %c0_4] : memref<1x128xf32, #tpu.memory_space<vmem>>, vector<1x128xf32>
    %4 = vector.broadcast %3 : vector<1x128xf32> to vector<16x128xf32>
    %5 = arith.addf %2, %4 : vector<16x128xf32>
    %6 = arith.negf %5 : vector<16x128xf32>
    %7 = math.exp %6 : vector<16x128xf32>
    %cst_5 = arith.constant 1.000000e+00 : f32
    %8 = vector.broadcast %cst_5 : f32 to vector<16x128xf32>
    %9 = arith.addf %8, %7 : vector<16x128xf32>
    %10 = arith.divf %8, %9 : vector<16x128xf32>
    %c0_6 = arith.constant 0 : index
    %c0_7 = arith.constant 0 : index
    %11 = vector.load %arg4[%c0_6, %c0_7] : memref<128x128xf32, #tpu.memory_space<vmem>>, vector<128x128xf32>
    %cst_8 = arith.constant dense<0.000000e+00> : vector<16x128xf32>
    %12 = tpu.matmul %10, %11, %cst_8 {dimension_numbers = #tpu.dot_dimension_numbers<[1], [1], [0], [0], [0, 0, 1, 0], [], []>} : vector<16x128xf32>, vector<128x128xf32>, vector<16x128xf32> -> vector<16x128xf32>
    %c0_9 = arith.constant 0 : index
    %c0_10 = arith.constant 0 : index
    %13 = vector.load %arg5[%c0_9, %c0_10] : memref<1x128xf32, #tpu.memory_space<vmem>>, vector<1x128xf32>
    %14 = vector.broadcast %13 : vector<1x128xf32> to vector<16x128xf32>
    %15 = arith.addf %12, %14 : vector<16x128xf32>
    %16 = arith.negf %15 : vector<16x128xf32>
    %17 = math.exp %16 : vector<16x128xf32>
    %cst_11 = arith.constant 1.000000e+00 : f32
    %18 = vector.broadcast %cst_11 : f32 to vector<16x128xf32>
    %19 = arith.addf %18, %17 : vector<16x128xf32>
    %20 = arith.divf %18, %19 : vector<16x128xf32>
    %c0_12 = arith.constant 0 : index
    %c0_13 = arith.constant 0 : index
    %21 = vector.load %arg6[%c0_12, %c0_13] : memref<16x128xf32, #tpu.memory_space<vmem>>, vector<16x128xf32>
    tpu.vector_store %arg6[%c0_12, %c0_13], %20 {strides = array<i32>} : memref<16x128xf32, #tpu.memory_space<vmem>>, vector<16x128xf32>,
    return
  }
  func.func @transform_0(%arg0: i32) -> (i32, i32) {
    %c0_i32 = arith.constant 0 : i32
    %c0_i32_0 = arith.constant 0 : i32
    return %arg0, %c0_i32 : i32, i32
  }
  func.func @transform_1(%arg0: i32) -> (i32, i32) {
    %c0_i32 = arith.constant 0 : i32
    %c0_i32_0 = arith.constant 0 : i32
    %c0_i32_1 = arith.constant 0 : i32
    return %c0_i32, %c0_i32_0 : i32, i32
  }
  func.func @transform_2(%arg0: i32) -> (i32, i32) {
    %c0_i32 = arith.constant 0 : i32
    %c0_i32_0 = arith.constant 0 : i32
    %c0_i32_1 = arith.constant 0 : i32
    return %c0_i32, %c0_i32_0 : i32, i32
  }
  func.func @transform_3(%arg0: i32) -> (i32, i32) {
    %c0_i32 = arith.constant 0 : i32
    %c0_i32_0 = arith.constant 0 : i32
    %c0_i32_1 = arith.constant 0 : i32
    return %c0_i32, %c0_i32_0 : i32, i32
  }
  func.func @transform_4(%arg0: i32) -> (i32, i32) {
    %c0_i32 = arith.constant 0 : i32
    %c0_i32_0 = arith.constant 0 : i32
    %c0_i32_1 = arith.constant 0 : i32
    return %c0_i32, %c0_i32_0 : i32, i32
  }
  func.func @transform_5(%arg0: i32) -> (i32, i32) {
    %c0_i32 = arith.constant 0 : i32
    %c0_i32_0 = arith.constant 0 : i32
    return %arg0, %c0_i32 : i32, i32
  }
}

</mosaic_0001>

<llo_original>
// kernel: autoencoder_forward.1
$region0: #{autoencoder_forward.1}
  #allocation0 [shape = 'u32[]', space=smem, size = 0x4, offset = 0x4, fixed_abs, tag = 'smem constant byte address 0x4 - core index']
  #allocation1 [shape = 'u32[72,128]{1,0:T(1,128)}', space=vmem, size = 0x9000, scoped, tag = 'internal scratch']
  %s0 = inlined_call_operand.vmem [shape: f32[16,128], index: 0, kind: input, shape index: {}]
  %s1 = inlined_call_operand.vmem [shape: f32[128,128], index: 1, kind: input, shape index: {}]
  %s2 = inlined_call_operand.vmem [shape: f32[1,128], index: 2, kind: input, shape index: {}]
  %s3 = inlined_call_operand.vmem [shape: f32[128,128], index: 3, kind: input, shape index: {}]
  %s4 = inlined_call_operand.vmem [shape: f32[1,128], index: 4, kind: input, shape index: {}]
  %s5 = inlined_call_operand.hbm [shape: f32[16,128], index: 5, kind: output, shape index: {}]
  %s6 = sld [smem:[#allocation0]]
  $region30: #{autoencoder_forward.1} parent=0
    _
  %s8 = ssub.s32 1, %s6
  %s9 = scalar_select 0, %s8, %s6
  $region1: #{autoencoder_forward.1} parent=0
    #allocation2 [shape = 'u8[8192]{0}', space=vmem, size = 0x2000, scoped, tag = 'output window, operand 0, single buffered']
    #allocation3 [shape = 's32[1]{0}', space=sflag, size = 0x4, scoped, tag = 'scoped memory for autoencoder_forward.1']
    %10 = vsyncpa [#allocation3], 0
    // Predicated region
    $region2: #{autoencoder_forward.1} parent=1 // pred_check
      _
    $region3: #{autoencoder_forward.1} parent=1 // pred_check_branch
      %12 = sbr.rel (0) target = $region5
    $region4: #{autoencoder_forward.1} parent=1 // pred_region
      _
    $region5: #{autoencoder_forward.1} parent=1 // pred_fallthru
      _
    // Predicated region
    $region6: #{autoencoder_forward.1} parent=1 // pred_check
      _
    $region7: #{autoencoder_forward.1} parent=1 // pred_check_branch
      %14 = sbr.rel (0) target = $region9
    $region8: #{autoencoder_forward.1} parent=1 // pred_region
      _
    $region9: #{autoencoder_forward.1} parent=1 // pred_fallthru
      _
    // Predicated region
    $region10: #{autoencoder_forward.1} parent=1 // pred_check
      _
    $region11: #{autoencoder_forward.1} parent=1 // pred_check_branch
      %16 = sbr.rel (0) target = $region13
    $region12: #{autoencoder_forward.1} parent=1 // pred_region
      _
    $region13: #{autoencoder_forward.1} parent=1 // pred_fallthru
      _
    // Predicated region
    $region14: #{autoencoder_forward.1} parent=1 // pred_check
      _
    $region15: #{autoencoder_forward.1} parent=1 // pred_check_branch
      %18 = sbr.rel (0) target = $region17
    $region16: #{autoencoder_forward.1} parent=1 // pred_region
      _
    $region17: #{autoencoder_forward.1} parent=1 // pred_fallthru
      _
    // Predicated region
    $region18: #{autoencoder_forward.1} parent=1 // pred_check
      _
    $region19: #{autoencoder_forward.1} parent=1 // pred_check_branch
      %20 = sbr.rel (0) target = $region21
    $region20: #{autoencoder_forward.1} parent=1 // pred_region
      _
    $region21: #{autoencoder_forward.1} parent=1 // pred_fallthru
      _
    %v21 = vld [vmem:[%s0] sm:$0xff]
    %v22 = vld [vmem:[%s0 + $0x8] sm:$0xff]
    %v23 = vld [vmem:[%s1] sm:$0xff]
    %v24 = vld [vmem:[%s1 + $0x8] sm:$0xff]
    %v25 = vld [vmem:[%s1 + $0x10] sm:$0xff]
    %v26 = vld [vmem:[%s1 + $0x18] sm:$0xff]
    %v27 = vld [vmem:[%s1 + $0x20] sm:$0xff]
    %v28 = vld [vmem:[%s1 + $0x28] sm:$0xff]
    %v29 = vld [vmem:[%s1 + $0x30] sm:$0xff]
    %v30 = vld [vmem:[%s1 + $0x38] sm:$0xff]
    %v31 = vld [vmem:[%s1 + $0x40] sm:$0xff]
    %v32 = vld [vmem:[%s1 + $0x48] sm:$0xff]
    %v33 = vld [vmem:[%s1 + $0x50] sm:$0xff]
    %v34 = vld [vmem:[%s1 + $0x58] sm:$0xff]
    %v35 = vld [vmem:[%s1 + $0x60] sm:$0xff]
    %v36 = vld [vmem:[%s1 + $0x68] sm:$0xff]
    %v37 = vld [vmem:[%s1 + $0x70] sm:$0xff]
    %v38 = vld [vmem:[%s1 + $0x78] sm:$0xff]
    %v39 = vld [vmem:[%s2] sm:$0x1]
    %v41 = vperm.slane %v39, 0
    %43 = vmatpush.xpose.msra.mxu0 %v38
    %44 = vmatpush.xpose.msra.mxu0 %v37
    %45 = vmatpush.xpose.msra.mxu0 %v36
    %46 = vmatpush.xpose.msra.mxu0 %v35
    %47 = vmatpush.xpose.msra.mxu0 %v34
    %48 = vmatpush.xpose.msra.mxu0 %v33
    %49 = vmatpush.xpose.msra.mxu0 %v32
    %50 = vmatpush.xpose.msra.mxu0 %v31
    %51 = vmatpush.xpose.msra.mxu0 %v30
    %52 = vmatpush.xpose.msra.mxu0 %v29
    %53 = vmatpush.xpose.msra.mxu0 %v28
    %54 = vmatpush.xpose.msra.mxu0 %v27
    %55 = vmatpush.xpose.msra.mxu0 %v26
    %56 = vmatpush.xpose.msra.mxu0 %v25
    %57 = vmatpush.xpose.msra.mxu0 %v24
    %58 = vmatpush.xpose.msra.mxu0 %v23
    %59 = vmatmul.f32.gmra.mxu0 %v21
    %v60 = vpop.f32.mrf.mxu0
    %v61 = vadd.f32 %v41, %v60
    %62 = vmatmul.f32.gmra.mxu0 %v22
    %v63 = vpop.f32.mrf.mxu0
    %v64 = vadd.f32 %v41, %v63
    %65 = vdwg.mxu0
    %v66 = vxor.u32 %v61, 2147483648
    %v67 = vxor.u32 %v64, 2147483648
    %v68 = vmul.f32 %v66, 1.442695
    %v69 = vpow.pop %v68
    %v70 = vmul.f32 %v67, 1.442695
    %v71 = vpow.pop %v70
    %v72 = vadd.f32 %v69, 1.0
    %v73 = vadd.f32 %v71, 1.0
    %v74 = vrcp.pop %v72
    %v75 = vmul.f32 %v72, %v74
    %v76 = vsub.f32 1.0, %v75
    %v77 = vmul.f32 %v74, %v76
    %v78 = vadd.f32 %v74, %v77
    %vm79 = vweird.f32 %v72
    %vm80 = vweird.f32 %v74
    %vm81 = vmor %vm79, %vm80
    %v82 = vsel %vm81, %v74, %v78
    %v83 = vand.u32 2147483647, %v72
    %vm84 = vcmp.eq.f32.partialorder %v83, 8.507059e+37
    %v85 = vand.u32 %v72, 2147483648
    %v86 = vor.u32 1.1754944e-38, %v85
    %v87 = vsel %vm84, %v86, %v82
    %v88 = vmul.f32 1.0, %v87
    %v89 = vrcp.pop %v73
    %v90 = vmul.f32 %v73, %v89
    %v91 = vsub.f32 1.0, %v90
    %v92 = vmul.f32 %v89, %v91
    %v93 = vadd.f32 %v89, %v92
    %vm94 = vweird.f32 %v73
    %vm95 = vweird.f32 %v89
    %vm96 = vmor %vm94, %vm95
    %v97 = vsel %vm96, %v89, %v93
    %v98 = vand.u32 2147483647, %v73
    %vm99 = vcmp.eq.f32.partialorder %v98, 8.507059e+37
    %v100 = vand.u32 %v73, 2147483648
    %v101 = vor.u32 1.1754944e-38, %v100
    %v102 = vsel %vm99, %v101, %v97
    %v103 = vmul.f32 1.0, %v102
    %v104 = vld [vmem:[%s3] sm:$0xff]
    %v105 = vld [vmem:[%s3 + $0x8] sm:$0xff]
    %v106 = vld [vmem:[%s3 + $0x10] sm:$0xff]
    %v107 = vld [vmem:[%s3 + $0x18] sm:$0xff]
    %v108 = vld [vmem:[%s3 + $0x20] sm:$0xff]
    %v109 = vld [vmem:[%s3 + $0x28] sm:$0xff]
    %v110 = vld [vmem:[%s3 + $0x30] sm:$0xff]
    %v111 = vld [vmem:[%s3 + $0x38] sm:$0xff]
    %v112 = vld [vmem:[%s3 + $0x40] sm:$0xff]
    %v113 = vld [vmem:[%s3 + $0x48] sm:$0xff]
    %v114 = vld [vmem:[%s3 + $0x50] sm:$0xff]
    %v115 = vld [vmem:[%s3 + $0x58] sm:$0xff]
    %v116 = vld [vmem:[%s3 + $0x60] sm:$0xff]
    %v117 = vld [vmem:[%s3 + $0x68] sm:$0xff]
    %v118 = vld [vmem:[%s3 + $0x70] sm:$0xff]
    %v119 = vld [vmem:[%s3 + $0x78] sm:$0xff]
    %v120 = vld [vmem:[%s4] sm:$0x1]
    %v122 = vperm.slane %v120, 0
    %124 = vmatpush.xpose.msra.mxu0 %v119
    %125 = vmatpush.xpose.msra.mxu0 %v118
    %126 = vmatpush.xpose.msra.mxu0 %v117
    %127 = vmatpush.xpose.msra.mxu0 %v116
    %128 = vmatpush.xpose.msra.mxu0 %v115
    %129 = vmatpush.xpose.msra.mxu0 %v114
    %130 = vmatpush.xpose.msra.mxu0 %v113
    %131 = vmatpush.xpose.msra.mxu0 %v112
    %132 = vmatpush.xpose.msra.mxu0 %v111
    %133 = vmatpush.xpose.msra.mxu0 %v110
    %134 = vmatpush.xpose.msra.mxu0 %v109
    %135 = vmatpush.xpose.msra.mxu0 %v108
    %136 = vmatpush.xpose.msra.mxu0 %v107
    %137 = vmatpush.xpose.msra.mxu0 %v106
    %138 = vmatpush.xpose.msra.mxu0 %v105
    %139 = vmatpush.xpose.msra.mxu0 %v104
    %140 = vmatmul.f32.gmra.mxu0 %v88
    %v141 = vpop.f32.mrf.mxu0
    %v142 = vadd.f32 %v122, %v141
    %143 = vmatmul.f32.gmra.mxu0 %v103
    %v144 = vpop.f32.mrf.mxu0
    %v145 = vadd.f32 %v122, %v144
    %146 = vdwg.mxu0
    %v147 = vxor.u32 %v142, 2147483648
    %v148 = vxor.u32 %v145, 2147483648
    %v149 = vmul.f32 %v147, 1.442695
    %v150 = vpow.pop %v149
    %v151 = vmul.f32 %v148, 1.442695
    %v152 = vpow.pop %v151
    %v153 = vadd.f32 %v150, 1.0
    %v154 = vadd.f32 %v152, 1.0
    %v155 = vrcp.pop %v153
    %v156 = vmul.f32 %v153, %v155
    %v157 = vsub.f32 1.0, %v156
    %v158 = vmul.f32 %v155, %v157
    %v159 = vadd.f32 %v155, %v158
    %vm160 = vweird.f32 %v153
    %vm161 = vweird.f32 %v155
    %vm162 = vmor %vm160, %vm161
    %v163 = vsel %vm162, %v155, %v159
    %v164 = vand.u32 2147483647, %v153
    %vm165 = vcmp.eq.f32.partialorder %v164, 8.507059e+37
    %v166 = vand.u32 %v153, 2147483648
    %v167 = vor.u32 1.1754944e-38, %v166
    %v168 = vsel %vm165, %v167, %v163
    %v169 = vmul.f32 1.0, %v168
    %v170 = vrcp.pop %v154
    %v171 = vmul.f32 %v154, %v170
    %v172 = vsub.f32 1.0, %v171
    %v173 = vmul.f32 %v170, %v172
    %v174 = vadd.f32 %v170, %v173
    %vm175 = vweird.f32 %v154
    %vm176 = vweird.f32 %v170
    %vm177 = vmor %vm175, %vm176
    %v178 = vsel %vm177, %v170, %v174
    %v179 = vand.u32 2147483647, %v154
    %vm180 = vcmp.eq.f32.partialorder %v179, 8.507059e+37
    %v181 = vand.u32 %v154, 2147483648
    %v182 = vor.u32 1.1754944e-38, %v181
    %v183 = vsel %vm180, %v182, %v178
    %v184 = vmul.f32 1.0, %v183
    %185 = vst [vmem:[#allocation2] sm:$0xff] %v169
    %186 = vst [vmem:[#allocation2 + $0x8] sm:$0xff] %v184
    // Predicated region
    $region22: #{autoencoder_forward.1} parent=1 // pred_check
      _
    $region23: #{autoencoder_forward.1} parent=1 // pred_check_branch
      %188 = sbr.rel (0) target = $region25
    $region24: #{autoencoder_forward.1} parent=1 // pred_region
      %190 = vsyncadd [#allocation3], 0
      %s191 = sshll.u32 [#allocation2], 4
      %s192 = int_to_ptr.vmem [resolvable:$true] %s191
      %s193 = sshll.u32 %s5, 4
      %s194 = int_to_ptr.hbm [resolvable:$true] %s193
      %199 = dma.vmem_to_hbm [thread:$0]  %s192, 256, %s194, [#allocation3], 128, 128, 8
    $region25: #{autoencoder_forward.1} parent=1 // pred_fallthru
      _
    // Predicated region
    $region26: #{autoencoder_forward.1} parent=1 // pred_check
      _
    $region27: #{autoencoder_forward.1} parent=1 // pred_check_branch
      %201 = sbr.rel (0) target = $region29
    $region28: #{autoencoder_forward.1} parent=1 // pred_region
      %203 = dma.done [#allocation3], 256
    $region29: #{autoencoder_forward.1} parent=1 // pred_fallthru
      _
    %204 = vsyncpa [#allocation3], 1

</llo_original>
